<compile_context>
chip_gen: v7x
topology: tpu7x:2x2x1
jax: 0.10.0
libtpu: 0.0.40
codegen_flags: <defaults>
</compile_context>

<pallas_src>
import functools

import jax
import jax.numpy as jnp
from jax.experimental import pallas as pl
from jax.experimental.pallas import tpu as pltpu

T = 0.07               # temperature
INV_T = 1.0 / T
EPS = 1e-12            # F.normalize eps (clamp_min on the norm)
_EPS_SQ = EPS * EPS


def _detect_tpu():
    """Return (physical VMEM bytes, is_v7x) with conservative fallbacks."""
    kind = ""
    try:
        kind = jax.devices()[0].device_kind.lower()
    except Exception:
        pass
    is_v7 = "v7" in kind
    try:
        vmem = int(pltpu.get_tpu_info().vmem_capacity_bytes)
    except Exception:
        # v4/v5e/v6e carry 128 MiB of VMEM; v7x (and anything unknown) gets the
        # conservative 64 MiB figure so we never over-commit.
        known_big = (not is_v7) and any(v in kind for v in ("v4", "v5", "v6"))
        vmem = (128 if known_big else 64) * 1024 * 1024
    return vmem, is_v7


def _infonce_kernel(q_ref, p_ref, n_ref, out_ref, m_sc, l_sc, pos_sc, *,
                    k_total, block_k, use_mxu):
    """One (batch-tile, K-tile) step of the online-logsumexp InfoNCE loss."""
    k_idx = pl.program_id(1)

    # Query-side scale: fold 1/max(||q||, eps) and 1/T into one per-row factor.
    # The (tb, D) q tile is resident across the whole K sweep; recomputing this
    # per step is a handful of VPU ops on a tiny tile.
    q_raw = q_ref[...]                                    # input dtype (bf16/f32)
    q = q_raw.astype(jnp.float32)
    q_scale = jax.lax.rsqrt(
        jnp.maximum(jnp.sum(q * q, axis=-1, keepdims=True), _EPS_SQ)) * INV_T

    @pl.when(k_idx == 0)
    def _init():
        p = p_ref[...].astype(jnp.float32)
        p_inv = jax.lax.rsqrt(
            jnp.maximum(jnp.sum(p * p, axis=-1, keepdims=True), _EPS_SQ))
        pos = jnp.sum(q * p, axis=-1, keepdims=True) * (q_scale * p_inv)  # (tb,1)
        pos_sc[...] = pos
        m_sc[...] = pos                      # running max starts at the pos logit
        l_sc[...] = jnp.ones_like(l_sc)      # exp(pos - m) == 1

    n = n_ref[...]                                        # (tb, tk, D) input dtype
    nf = n.astype(jnp.float32)
    n_sq = jnp.sum(nf * nf, axis=-1)                      # (tb, tk) f32
    if use_mxu:
        # v7x: dominant MAC on the MXU directly in the input dtype (bf16
        # products are exact in the f32 accumulator); scale applied after.
        neg_dot = jax.lax.dot_general(
            q_raw[:, None, :], n,
            dimension_numbers=(((2,), (2,)), ((0,), (0,))),
            preferred_element_type=jnp.float32)[:, 0, :]          # (tb, tk)
    else:
        # v5e/v6e: HBM-bound; VPU broadcast-multiply + lane reduce is fine.
        neg_dot = jnp.sum(nf * q[:, None, :], axis=-1)            # (tb, tk)
    neg_s = (neg_dot * q_scale) * jax.lax.rsqrt(jnp.maximum(n_sq, _EPS_SQ))

    if k_total % block_k != 0:
        # Trailing K tile reads past the end of the array: mask those columns.
        col = jax.lax.broadcasted_iota(jnp.int32, neg_s.shape, 1) + k_idx * block_k
        neg_s = jnp.where(col < k_total, neg_s, -jnp.inf)

    # Online logsumexp update over this K tile.
    m_prev = m_sc[...]
    m_new = jnp.maximum(m_prev, jnp.max(neg_s, axis=-1, keepdims=True))
    l_sc[...] = (l_sc[...] * jnp.exp(m_prev - m_new)
                 + jnp.sum(jnp.exp(neg_s - m_new), axis=-1, keepdims=True))
    m_sc[...] = m_new

    @pl.when(k_idx == pl.num_programs(1) - 1)
    def _finalize():
        out_ref[...] = (m_sc[...] + jnp.log(l_sc[...])
                        - pos_sc[...]).astype(out_ref.dtype)


def info_nce_loss(query, pos, neg, *, compute_dtype=jnp.bfloat16,
                  tile_batch=None, tile_k=None, use_mxu=None):
    """query: (B, dim), pos: (B, dim), neg: (B, K, dim) -> scalar f32 loss."""
    B, D = query.shape
    Bn, K, Dn = neg.shape
    assert (Bn, Dn) == (B, D) and pos.shape == (B, D)

    # Review item 1: stream the HBM-dominant tensors in bf16; f32 accumulation
    # stays inside the kernel.  (In a fused model the producer should emit
    # compute_dtype directly, making this cast a no-op.)
    compute_dtype = jnp.dtype(compute_dtype)
    query, pos, neg = tuple(
        x.astype(compute_dtype) if x.dtype != compute_dtype else x
        for x in (query, pos, neg))

    vmem_bytes, is_v7 = _detect_tpu()
    if use_mxu is None:
        # MXU offload only pays on v7x and only with sub-32-bit operands.
        use_mxu = is_v7 and compute_dtype.itemsize < 4

    # Generation-aware VMEM budgeting (item 4): scoped limit ~3/4 of physical
    # (96 MiB on v5e/v6e's 128 MiB, 48 MiB on v7x's 64 MiB); the per-step neg
    # footprint gets ~1/3 of that, counted as 2x double-buffered input bytes
    # plus ~12 B/element of in-kernel f32 intermediates.
    vmem_limit = min(int(vmem_bytes * 3 // 4), 96 * 1024 * 1024)
    bytes_per_elem = 2 * compute_dtype.itemsize + 12
    elems_budget = max((vmem_limit // 3) // bytes_per_elem, 8 * D)

    def _fit(t, full):
        """Clamp a tile size: full dim, or a multiple of 8 below it."""
        t = int(min(t, full))
        if t >= full:
            return full
        t = (t // 8) * 8
        return min(8, full) if t < 8 else t

    min_tb = min(8, B)
    if tile_k is not None:
        tk = _fit(tile_k, K)
    elif min_tb * K * D > elems_budget:
        tk = _fit(max(1, elems_budget // (min_tb * D)), K)   # item 6: tile K
    else:
        tk = K

    if tile_batch is not None:
        tb = _fit(tile_batch, B)
    else:
        tb = _fit(max(1, elems_budget // (tk * D)), B)
        if is_v7 and B >= 16 and tb >= B:
            # Item 5: make sure both v7x TensorCores get batch tiles.
            tb = _fit(max(8, B // 2), B)

    grid = (pl.cdiv(B, tb), pl.cdiv(K, tk))
    kernel = functools.partial(_infonce_kernel, k_total=K, block_k=tk,
                               use_mxu=bool(use_mxu))

    per_sample = pl.pallas_call(
        kernel,
        out_shape=jax.ShapeDtypeStruct((B, 1), jnp.float32),
        grid_spec=pltpu.PrefetchScalarGridSpec(
            num_scalar_prefetch=0,
            grid=grid,
            in_specs=[
                pl.BlockSpec((tb, D), lambda i, k: (i, 0)),         # query tile
                pl.BlockSpec((tb, D), lambda i, k: (i, 0)),         # pos tile
                pl.BlockSpec((tb, tk, D), lambda i, k: (i, k, 0)),  # neg tile
            ],
            out_specs=pl.BlockSpec((tb, 1), lambda i, k: (i, 0)),
            scratch_shapes=[pltpu.VMEM((tb, 1), jnp.float32)] * 3,  # m, l, pos
        ),
        compiler_params=pltpu.CompilerParams(
            # Batch tiles are independent (parallel; v7x megacore splits them);
            # the K axis is an online-logsumexp reduction (arbitrary, innermost).
            dimension_semantics=("parallel", "arbitrary"),
            vmem_limit_bytes=vmem_limit,
        ),
    )(query, pos, neg)

    # CrossEntropyLoss reduction='mean' over the batch.
    return jnp.mean(per_sample)


def _reference_loss(q, p, n):
    """Pure-JAX reference (same math as the PyTorch module)."""
    norm = lambda x: x / jnp.maximum(
        jnp.linalg.norm(x, axis=-1, keepdims=True), EPS)
    qn, pn, nn_ = norm(q), norm(p), norm(n)
    pos_s = jnp.sum(qn * pn, axis=-1, keepdims=True)            # (B, 1)
    neg_s = jnp.einsum("bd,bkd->bk", qn, nn_)                   # (B, K)
    logits = jnp.concatenate([pos_s, neg_s], axis=1) / T
    lse = jax.scipy.special.logsumexp(logits, axis=1)
    return jnp.mean(lse - logits[:, 0])


if __name__ == "__main__":
    # Small, deterministic configuration consistent with the module.
    batch_size = 2     # config['batch_size']
    K_neg = 8          # config['neg_num']
    dim = 32           # config['output_dim']

    key = jax.random.PRNGKey(0)
    kq, kp, kn = jax.random.split(key, 3)
    query = jax.random.normal(kq, (batch_size, dim), dtype=jnp.float32)
    pos = jax.random.normal(kp, (batch_size, dim), dtype=jnp.float32)
    neg = jax.random.normal(kn, (batch_size, K_neg, dim), dtype=jnp.float32)

    # 1) f32 path: directly comparable with the PyTorch-equivalent reference.
    loss_f32 = info_nce_loss(query, pos, neg, compute_dtype=jnp.float32)
    jax.block_until_ready(loss_f32)
    assert jnp.allclose(loss_f32, _reference_loss(query, pos, neg),
                        atol=2e-5, rtol=2e-5)

    # 2) default bf16 streaming path: compare against the reference evaluated
    #    on the same bf16-rounded inputs (kernel accumulates in f32).
    loss_bf16 = info_nce_loss(query, pos, neg)
    jax.block_until_ready(loss_bf16)
    rq, rp, rn = (x.astype(jnp.bfloat16).astype(jnp.float32)
                  for x in (query, pos, neg))
    assert jnp.allclose(loss_bf16, _reference_loss(rq, rp, rn),
                        atol=1e-3, rtol=1e-3)

    # 3) multi-tile pipelined path: partial tiles on both grid axes
    #    (B=20, K=20 with 8x8 tiles -> 3x3 grid, trailing-tile masking and
    #    online logsumexp across K tiles).
    B2, K2 = 20, 20
    kq2, kp2, kn2 = jax.random.split(jax.random.PRNGKey(1), 3)
    q2 = jax.random.normal(kq2, (B2, dim), dtype=jnp.float32)
    p2 = jax.random.normal(kp2, (B2, dim), dtype=jnp.float32)
    n2 = jax.random.normal(kn2, (B2, K2, dim), dtype=jnp.float32)

    loss2_f32 = info_nce_loss(q2, p2, n2, compute_dtype=jnp.float32,
                              tile_batch=8, tile_k=8)
    jax.block_until_ready(loss2_f32)
    assert jnp.allclose(loss2_f32, _reference_loss(q2, p2, n2),
                        atol=2e-5, rtol=2e-5)

    loss2_bf16 = info_nce_loss(q2, p2, n2, tile_batch=8, tile_k=8)
    jax.block_until_ready(loss2_bf16)
    rq2, rp2, rn2 = (x.astype(jnp.bfloat16).astype(jnp.float32)
                     for x in (q2, p2, n2))
    assert jnp.allclose(loss2_bf16, _reference_loss(rq2, rp2, rn2),
                        atol=1e-3, rtol=1e-3)

    print("KERNEL_OK")
</pallas_src>

<mosaic_0001>
module attributes {stable_mosaic.version = 11 : i64} {
  func.func @_infonce_kernel(%arg0: i32, %arg1: i32, %arg2: memref<2x32xf32, #tpu.memory_space<vmem>>, %arg3: memref<2x32xf32, #tpu.memory_space<vmem>>, %arg4: memref<2x8x32xf32, #tpu.memory_space<vmem>>, %arg5: memref<2x1xf32, #tpu.memory_space<vmem>>, %arg6: memref<2x1xf32, #tpu.memory_space<vmem>>, %arg7: memref<2x1xf32, #tpu.memory_space<vmem>>, %arg8: memref<2x1xf32, #tpu.memory_space<vmem>>) attributes {dimension_semantics = [#tpu.dimension_semantics<parallel>, #tpu.dimension_semantics<arbitrary>], iteration_bounds = array<i64: 1, 1>, scalar_prefetch = 0 : i64, scratch_operands = 3 : i64, tpu.core_type = #tpu.core_type<tc>, window_params = [{transform_indices = @transform_0, window_bounds = array<i64: 2, 32>}, {transform_indices = @transform_1, window_bounds = array<i64: 2, 32>}, {transform_indices = @transform_2, window_bounds = array<i64: 2, 8, 32>}, {transform_indices = @transform_3, window_bounds = array<i64: 2, 1>}]} {
    %c0 = arith.constant 0 : index
    %c0_0 = arith.constant 0 : index
    %0 = vector.load %arg2[%c0, %c0_0] : memref<2x32xf32, #tpu.memory_space<vmem>>, vector<2x32xf32>
    %1 = arith.mulf %0, %0 : vector<2x32xf32>
    %cst = arith.constant dense<0.000000e+00> : vector<2xf32>
    %2 = vector.multi_reduction <add>, %1, %cst [1] : vector<2x32xf32> to vector<2xf32>
    %3 = vector.shape_cast %2 : vector<2xf32> to vector<2x1xf32>
    %cst_1 = arith.constant 1.000000e-24 : f32
    %4 = vector.broadcast %cst_1 : f32 to vector<2x1xf32>
    %5 = arith.maximumf %3, %4 : vector<2x1xf32>
    %6 = math.rsqrt %5 : vector<2x1xf32>
    %cst_2 = arith.constant 14.2857141 : f32
    %7 = vector.broadcast %cst_2 : f32 to vector<2x1xf32>
    %8 = arith.mulf %6, %7 : vector<2x1xf32>
    %c0_i32 = arith.constant 0 : i32
    %9 = arith.cmpi eq, %arg1, %c0_i32 : i32
    %10 = arith.extui %9 : i1 to i32
    %c0_i32_3 = arith.constant 0 : i32
    %11 = arith.cmpi ne, %10, %c0_i32_3 : i32
    scf.if %11 {
      %c0_22 = arith.constant 0 : index
      %c0_23 = arith.constant 0 : index
      %44 = vector.load %arg3[%c0_22, %c0_23] : memref<2x32xf32, #tpu.memory_space<vmem>>, vector<2x32xf32>
      %45 = arith.mulf %44, %44 : vector<2x32xf32>
      %cst_24 = arith.constant dense<0.000000e+00> : vector<2xf32>
      %46 = vector.multi_reduction <add>, %45, %cst_24 [1] : vector<2x32xf32> to vector<2xf32>
      %47 = vector.shape_cast %46 : vector<2xf32> to vector<2x1xf32>
      %cst_25 = arith.constant 1.000000e-24 : f32
      %48 = vector.broadcast %cst_25 : f32 to vector<2x1xf32>
      %49 = arith.maximumf %47, %48 : vector<2x1xf32>
      %50 = math.rsqrt %49 : vector<2x1xf32>
      %51 = arith.mulf %0, %44 : vector<2x32xf32>
      %cst_26 = arith.constant dense<0.000000e+00> : vector<2xf32>
      %52 = vector.multi_reduction <add>, %51, %cst_26 [1] : vector<2x32xf32> to vector<2xf32>
      %53 = vector.shape_cast %52 : vector<2xf32> to vector<2x1xf32>
      %54 = arith.mulf %8, %50 : vector<2x1xf32>
      %55 = arith.mulf %53, %54 : vector<2x1xf32>
      %c0_27 = arith.constant 0 : index
      %c0_28 = arith.constant 0 : index
      %56 = vector.load %arg8[%c0_27, %c0_28] : memref<2x1xf32, #tpu.memory_space<vmem>>, vector<2x1xf32>
      tpu.vector_store %arg8[%c0_27, %c0_28], %55 {strides = array<i32>} : memref<2x1xf32, #tpu.memory_space<vmem>>, vector<2x1xf32>,
      %c0_29 = arith.constant 0 : index
      %c0_30 = arith.constant 0 : index
      %57 = vector.load %arg6[%c0_29, %c0_30] : memref<2x1xf32, #tpu.memory_space<vmem>>, vector<2x1xf32>
      tpu.vector_store %arg6[%c0_29, %c0_30], %55 {strides = array<i32>} : memref<2x1xf32, #tpu.memory_space<vmem>>, vector<2x1xf32>,
      %cst_31 = arith.constant 1.000000e+00 : f32
      %58 = vector.broadcast %cst_31 : f32 to vector<2x1xf32>
      %c0_32 = arith.constant 0 : index
      %c0_33 = arith.constant 0 : index
      %59 = vector.load %arg7[%c0_32, %c0_33] : memref<2x1xf32, #tpu.memory_space<vmem>>, vector<2x1xf32>
      tpu.vector_store %arg7[%c0_32, %c0_33], %58 {strides = array<i32>} : memref<2x1xf32, #tpu.memory_space<vmem>>, vector<2x1xf32>,
    } else {
    }
    %c0_4 = arith.constant 0 : index
    %c0_5 = arith.constant 0 : index
    %c0_6 = arith.constant 0 : index
    %12 = vector.load %arg4[%c0_4, %c0_5, %c0_6] : memref<2x8x32xf32, #tpu.memory_space<vmem>>, vector<2x8x32xf32>
    %13 = arith.mulf %12, %12 : vector<2x8x32xf32>
    %cst_7 = arith.constant dense<0.000000e+00> : vector<2x8xf32>
    %14 = vector.multi_reduction <add>, %13, %cst_7 [2] : vector<2x8x32xf32> to vector<2x8xf32>
    %15 = vector.shape_cast %0 : vector<2x32xf32> to vector<2x1x32xf32>
    %16 = vector.broadcast %15 : vector<2x1x32xf32> to vector<2x8x32xf32>
    %17 = arith.mulf %12, %16 : vector<2x8x32xf32>
    %cst_8 = arith.constant dense<0.000000e+00> : vector<2x8xf32>
    %18 = vector.multi_reduction <add>, %17, %cst_8 [2] : vector<2x8x32xf32> to vector<2x8xf32>
    %19 = vector.broadcast %8 : vector<2x1xf32> to vector<2x8xf32>
    %20 = arith.mulf %18, %19 : vector<2x8xf32>
    %cst_9 = arith.constant 1.000000e-24 : f32
    %21 = vector.broadcast %cst_9 : f32 to vector<2x8xf32>
    %22 = arith.maximumf %14, %21 : vector<2x8xf32>
    %23 = math.rsqrt %22 : vector<2x8xf32>
    %24 = arith.mulf %20, %23 : vector<2x8xf32>
    %c0_10 = arith.constant 0 : index
    %c0_11 = arith.constant 0 : index
    %25 = vector.load %arg6[%c0_10, %c0_11] : memref<2x1xf32, #tpu.memory_space<vmem>>, vector<2x1xf32>
    %cst_12 = arith.constant dense<0xFF800000> : vector<2xf32>
    %26 = vector.multi_reduction <maximumf>, %24, %cst_12 [1] : vector<2x8xf32> to vector<2xf32>
    %27 = vector.shape_cast %26 : vector<2xf32> to vector<2x1xf32>
    %28 = arith.maximumf %25, %27 : vector<2x1xf32>
    %c0_13 = arith.constant 0 : index
    %c0_14 = arith.constant 0 : index
    %29 = vector.load %arg7[%c0_13, %c0_14] : memref<2x1xf32, #tpu.memory_space<vmem>>, vector<2x1xf32>
    %30 = arith.subf %25, %28 : vector<2x1xf32>
    %31 = math.exp %30 : vector<2x1xf32>
    %32 = arith.mulf %29, %31 : vector<2x1xf32>
    %33 = vector.broadcast %28 : vector<2x1xf32> to vector<2x8xf32>
    %34 = arith.subf %24, %33 : vector<2x8xf32>
    %35 = math.exp %34 : vector<2x8xf32>
    %cst_15 = arith.constant dense<0.000000e+00> : vector<2xf32>
    %36 = vector.multi_reduction <add>, %35, %cst_15 [1] : vector<2x8xf32> to vector<2xf32>
    %37 = vector.shape_cast %36 : vector<2xf32> to vector<2x1xf32>
    %38 = arith.addf %32, %37 : vector<2x1xf32>
    %c0_16 = arith.constant 0 : index
    %c0_17 = arith.constant 0 : index
    %39 = vector.load %arg7[%c0_16, %c0_17] : memref<2x1xf32, #tpu.memory_space<vmem>>, vector<2x1xf32>
    tpu.vector_store %arg7[%c0_16, %c0_17], %38 {strides = array<i32>} : memref<2x1xf32, #tpu.memory_space<vmem>>, vector<2x1xf32>,
    %c0_18 = arith.constant 0 : index
    %c0_19 = arith.constant 0 : index
    %40 = vector.load %arg6[%c0_18, %c0_19] : memref<2x1xf32, #tpu.memory_space<vmem>>, vector<2x1xf32>
    tpu.vector_store %arg6[%c0_18, %c0_19], %28 {strides = array<i32>} : memref<2x1xf32, #tpu.memory_space<vmem>>, vector<2x1xf32>,
    %c0_i32_20 = arith.constant 0 : i32
    %41 = arith.cmpi eq, %arg1, %c0_i32_20 : i32
    %42 = arith.extui %41 : i1 to i32
    %c0_i32_21 = arith.constant 0 : i32
    %43 = arith.cmpi ne, %42, %c0_i32_21 : i32
    scf.if %43 {
      %c0_22 = arith.constant 0 : index
      %c0_23 = arith.constant 0 : index
      %44 = vector.load %arg6[%c0_22, %c0_23] : memref<2x1xf32, #tpu.memory_space<vmem>>, vector<2x1xf32>
      %c0_24 = arith.constant 0 : index
      %c0_25 = arith.constant 0 : index
      %45 = vector.load %arg7[%c0_24, %c0_25] : memref<2x1xf32, #tpu.memory_space<vmem>>, vector<2x1xf32>
      %46 = math.log %45 : vector<2x1xf32>
      %47 = arith.addf %44, %46 : vector<2x1xf32>
      %c0_26 = arith.constant 0 : index
      %c0_27 = arith.constant 0 : index
      %48 = vector.load %arg8[%c0_26, %c0_27] : memref<2x1xf32, #tpu.memory_space<vmem>>, vector<2x1xf32>
      %49 = arith.subf %47, %48 : vector<2x1xf32>
      %c0_28 = arith.constant 0 : index
      %c0_29 = arith.constant 0 : index
      %50 = vector.load %arg5[%c0_28, %c0_29] : memref<2x1xf32, #tpu.memory_space<vmem>>, vector<2x1xf32>
      tpu.vector_store %arg5[%c0_28, %c0_29], %49 {strides = array<i32>} : memref<2x1xf32, #tpu.memory_space<vmem>>, vector<2x1xf32>,
    } else {
    }
    return
  }
  func.func @transform_0(%arg0: i32, %arg1: i32) -> (i32, i32) {
    %c0_i32 = arith.constant 0 : i32
    %c0_i32_0 = arith.constant 0 : i32
    return %arg0, %c0_i32 : i32, i32
  }
  func.func @transform_1(%arg0: i32, %arg1: i32) -> (i32, i32) {
    %c0_i32 = arith.constant 0 : i32
    %c0_i32_0 = arith.constant 0 : i32
    return %arg0, %c0_i32 : i32, i32
  }
  func.func @transform_2(%arg0: i32, %arg1: i32) -> (i32, i32, i32) {
    %c0_i32 = arith.constant 0 : i32
    %c0_i32_0 = arith.constant 0 : i32
    return %arg0, %arg1, %c0_i32 : i32, i32, i32
  }
  func.func @transform_3(%arg0: i32, %arg1: i32) -> (i32, i32) {
    %c0_i32 = arith.constant 0 : i32
    %c0_i32_0 = arith.constant 0 : i32
    return %arg0, %c0_i32 : i32, i32
  }
}

</mosaic_0001>

<llo_original>
// kernel: tpu_custom_call.1
$region0: #{tpu_custom_call.1}
  #allocation0 [shape = 'u32[]', space=smem, size = 0x4, offset = 0x4, fixed_abs, tag = 'smem constant byte address 0x4 - core index']
  #allocation1 [shape = 'u32[144,128]{1,0:T(1,128)}', space=vmem, size = 0x12000, scoped, tag = 'internal scratch']
  #allocation2 [shape = 'f32[2,1]{1,0:T(2,128)}', space=vmem, size = 0x400, scoped, tag = 'scratch operand']
  #allocation3 [shape = 'f32[2,1]{1,0:T(2,128)}', space=vmem, size = 0x400, scoped, tag = 'scratch operand']
  #allocation4 [shape = 'f32[2,1]{1,0:T(2,128)}', space=vmem, size = 0x400, scoped, tag = 'scratch operand']
  %s0 = inlined_call_operand.hbm [shape: f32[2,32], index: 0, kind: input, shape index: {}]
  %s1 = inlined_call_operand.vmem [shape: f32[2,32], index: 1, kind: input, shape index: {}]
  %s2 = inlined_call_operand.hbm [shape: f32[2,8,32], index: 2, kind: input, shape index: {}]
  %s3 = inlined_call_operand.vmem [shape: f32[2,1], index: 3, kind: output, shape index: {}]
  %s4 = sld [smem:[#allocation0]]
  $region38: #{tpu_custom_call.1} parent=0
    _
  %s6 = ssub.s32 1, %s4
  %s7 = scalar_select 0, %s6, %s4
  $region1: #{tpu_custom_call.1} parent=0
    #allocation5 [shape = 'u8[1024]{0}', space=vmem, size = 0x400, scoped, tag = 'input window, operand 0, single buffered']
    #allocation6 [shape = 's32[1]{0}', space=sflag, size = 0x4, scoped, tag = 'scoped memory for tpu_custom_call.1']
    #allocation7 [shape = 'u8[8192]{0}', space=vmem, size = 0x2000, scoped, tag = 'input window, operand 2, single buffered']
    #allocation8 [shape = 's32[1]{0}', space=sflag, size = 0x4, scoped, tag = 'scoped memory for tpu_custom_call.1']
    %8 = vsyncpa [#allocation6], 0
    %9 = vsyncpa [#allocation8], 0
    // Predicated region
    $region2: #{tpu_custom_call.1} parent=1 // pred_check
      _
    $region3: #{tpu_custom_call.1} parent=1 // pred_check_branch
      %11 = sbr.rel (0) target = $region5
    $region4: #{tpu_custom_call.1} parent=1 // pred_region
      %s13 = ssub.s32 32, 32
      %14 = vsyncadd [#allocation6], %s13
      %s16 = sshll.u32 [#allocation5], 4
      %s17 = int_to_ptr.vmem [resolvable:$true] %s16
      %19 = dma.hbm_to_vmem [thread:$0]  %s0, 32, %s17, [#allocation6]
    $region5: #{tpu_custom_call.1} parent=1 // pred_fallthru
      _
    // Predicated region
    $region6: #{tpu_custom_call.1} parent=1 // pred_check
      _
    $region7: #{tpu_custom_call.1} parent=1 // pred_check_branch
      %21 = sbr.rel (0) target = $region9
    $region8: #{tpu_custom_call.1} parent=1 // pred_region
      _
    $region9: #{tpu_custom_call.1} parent=1 // pred_fallthru
      _
    // Predicated region
    $region10: #{tpu_custom_call.1} parent=1 // pred_check
      _
    $region11: #{tpu_custom_call.1} parent=1 // pred_check_branch
      %23 = sbr.rel (0) target = $region13
    $region12: #{tpu_custom_call.1} parent=1 // pred_region
      %s25 = ssub.s32 256, 256
      %26 = vsyncadd [#allocation8], %s25
      %s27 = sshll.u32 [#allocation7], 4
      %s28 = int_to_ptr.vmem [resolvable:$true] %s27
      %33 = dma.hbm_to_vmem [thread:$0]  %s2, 256, %s28, [#allocation8], 128, 128, 8
    $region13: #{tpu_custom_call.1} parent=1 // pred_fallthru
      _
    // Predicated region
    $region14: #{tpu_custom_call.1} parent=1 // pred_check
      _
    $region15: #{tpu_custom_call.1} parent=1 // pred_check_branch
      %35 = sbr.rel (0) target = $region17
    $region16: #{tpu_custom_call.1} parent=1 // pred_region
      %36 = dma.done [#allocation6], 32
    $region17: #{tpu_custom_call.1} parent=1 // pred_fallthru
      _
    // Predicated region
    $region18: #{tpu_custom_call.1} parent=1 // pred_check
      _
    $region19: #{tpu_custom_call.1} parent=1 // pred_check_branch
      %38 = sbr.rel (0) target = $region21
    $region20: #{tpu_custom_call.1} parent=1 // pred_region
      %39 = dma.done [#allocation8], 256
    $region21: #{tpu_custom_call.1} parent=1 // pred_fallthru
      _
    %v40 = vld [vmem:[#allocation5] sm:$0x3]
    %v41 = vmul.f32 %v40, %v40
    %vm42 = vcmask 254976
    %v43 = vsel %vm42, %v41, 0.0
    %44 = vadd.xlane.f32.xlu0 %v43
    %v45 = vpop.xlane.xlu0 %44
    %v46 = vmax.f32 %v45, 1e-24
    %v47 = vrsqrt.pop %v46
    %v48 = vmul.f32 %v47, 14.285714
    %p49 = scmp.eq.s32.totalorder 0, 0
    // Predicated region
    $region22: #{tpu_custom_call.1} parent=1 // pred_check
      %p50 = pneg %p49
    $region23: #{tpu_custom_call.1} parent=1 // pred_check_branch
      %52 = sbr.rel (%p50) target = $region25
    $region24: #{tpu_custom_call.1} parent=1 // pred_region
      %v53 = vld [vmem:[%s1] sm:$0x3]
      %v54 = vmul.f32 %v53, %v53
      %v55 = vsel %vm42, %v54, 0.0
      %56 = vadd.xlane.f32.xlu0 %v55
      %v57 = vpop.xlane.xlu0 %56
      %v58 = vmax.f32 %v57, 1e-24
      %v59 = vrsqrt.pop %v58
      %v60 = vmul.f32 %v40, %v53
      %v61 = vsel %vm42, %v60, 0.0
      %62 = vadd.xlane.f32.xlu0 %v61
      %v63 = vpop.xlane.xlu0 %62
      %v64 = vmul.f32 %v48, %v59
      %v65 = vmul.f32 %v63, %v64
      %vm66 = vcmask 1024
      %67 = vst.msk [vmem:[#allocation4] sm:$0x3] %vm66, %v65
      %68 = vst.msk [vmem:[#allocation2] sm:$0x3] %vm66, %v65
      %69 = vst.msk [vmem:[#allocation3] sm:$0x3] %vm66, 1.0
    $region25: #{tpu_custom_call.1} parent=1 // pred_fallthru
      _
    %v70 = vld [vmem:[#allocation7] sm:$0xff]
    %v71 = vld [vmem:[#allocation7 + $0x8] sm:$0xff]
    %v72 = vmul.f32 %v70, %v70
    %v73 = vmul.f32 %v71, %v71
    %vm74 = vcmask 261120
    %v75 = vsel %vm74, %v72, 0.0
    %76 = vadd.xlane.f32.xlu0 %v75
    %v77 = vpop.xlane.xlu0 %76
    %v78 = vsel %vm74, %v73, 0.0
    %79 = vadd.xlane.f32.xlu0 %v78
    %v80 = vpop.xlane.xlu0 %79
    %v83 = vunpack.c.l.s4 1966171168
    %v84 = vunpack.c.0.s8 %v83
    %v85 = vlaneseq
    %v86 = vshrl.u32 %v85, 7
    %v87 = vsub.s32 %v84, %v86
    %v88 = vrot.slane %v40, %v87
    %v89 = vcombine.high %v88, %v88
    %v91 = vunpack.c.l.s4 1966171168
    %v92 = vunpack.c.0.s8 %v91
    %v93 = vlaneseq
    %v94 = vshrl.u32 %v93, 7
    %v95 = vsub.s32 %v92, %v94
    %v96 = vrot.slane %v88, %v95
    %v98 = vunpack.c.l.s4 1966171168
    %v99 = vunpack.c.0.s8 %v98
    %v100 = vlaneseq
    %v101 = vshrl.u32 %v100, 7
    %v102 = vsub.s32 %v99, %v101
    %v103 = vrot.slane %v89, %v102
    %v104 = vlaneseq
    %v105 = vshrl.u32 %v104, 7
    %v106 = vsub.s32 0, %v105
    %v107 = vrot.slane %v96, %v106
    %v108 = vlaneseq
    %v109 = vshrl.u32 %v108, 7
    %v110 = vsub.s32 0, %v109
    %v111 = vrot.slane %v103, %v110
    %v114 = vmul.f32 %v70, %v107
    %v115 = vmul.f32 %v71, %v111
    %v116 = vsel %vm74, %v114, 0.0
    %117 = vadd.xlane.f32.xlu0 %v116
    %v118 = vpop.xlane.xlu0 %117
    %v119 = vsel %vm74, %v115, 0.0
    %120 = vadd.xlane.f32.xlu0 %v119
    %v121 = vpop.xlane.xlu0 %120
    %v123 = vlaneseq
    %v124 = vshrl.u32 %v123, 7
    %v125 = vsub.s32 0, %v124
    %v126 = vrot.slane %v48, %v125
    %v127 = vlaneseq
    %v128 = vshrl.u32 %v127, 7
    %v129 = vsub.s32 1, %v128
    %v130 = vrot.slane %v48, %v129
    %v133 = vmul.f32 %v118, %v126
    %v134 = vmul.f32 %v121, %v130
    %v135 = vmax.f32 %v77, 1e-24
    %v136 = vmax.f32 %v80, 1e-24
    %v137 = vrsqrt.pop %v135
    %v138 = vrsqrt.pop %v136
    %v139 = vmul.f32 %v133, %v137
    %v140 = vmul.f32 %v134, %v138
    %v141 = vld [vmem:[#allocation2] sm:$0x3]
    %144 = vset.pattern.permute.xlu0 0
    %145 = vperm.xlu0 %144, %v139
    %v146 = vpop.permute.xlu0 %145
    %147 = vset.pattern.permute.xlu0 0
    %148 = vperm.xlu0 %147, %v140
    %v149 = vpop.permute.xlu0 %148
    %v150 = vlaneseq
    %v151 = vand.u32 %v150, 127
    %v152 = vlaneseq
    %v153 = vshrl.u32 %v152, 7
    %v154 = vsub.s32 %v151, %v153
    %v155 = vrot.slane %v146, %v154
    %v156 = vlaneseq
    %v157 = vshrl.u32 %v156, 7
    %v158 = vsub.s32 %v151, %v157
    %v159 = vrot.slane %v149, %v158
    %vm160 = vcmask 1041409
    %v161 = vsel %vm160, %v159, %v155
    %vm163 = vcmask 58368
    %v164 = vsel %vm163, %v161, -inf
    %165 = vmax.xlane.f32.xlu0 %v164
    %v166 = vpop.xlane.xlu0 %165
    %v167 = vmax.f32 %v141, %v166
    %v168 = vld [vmem:[#allocation3] sm:$0x3]
    %v169 = vsub.f32 %v141, %v167
    %v170 = vmul.f32 %v169, 1.442695
    %v171 = vpow.pop %v170
    %v172 = vmul.f32 %v168, %v171
    %174 = vset.pattern.permute.xlu0 0
    %175 = vperm.xlu0 %174, %v167
    %v176 = vpop.permute.xlu0 %175
    %v177 = vlaneseq
    %v178 = vshrl.u32 %v177, 7
    %v179 = vsub.s32 0, %v178
    %v180 = vrot.slane %v176, %v179
    %v181 = vlaneseq
    %v182 = vshrl.u32 %v181, 7
    %v183 = vsub.s32 1, %v182
    %v184 = vrot.slane %v176, %v183
    %v187 = vsub.f32 %v139, %v180
    %v188 = vsub.f32 %v140, %v184
    %v189 = vmul.f32 %v187, 1.442695
    %v190 = vpow.pop %v189
    %v191 = vmul.f32 %v188, 1.442695
    %v192 = vpow.pop %v191
    %195 = vset.pattern.permute.xlu0 0
    %196 = vperm.xlu0 %195, %v190
    %v197 = vpop.permute.xlu0 %196
    %198 = vset.pattern.permute.xlu0 0
    %199 = vperm.xlu0 %198, %v192
    %v200 = vpop.permute.xlu0 %199
    %v201 = vlaneseq
    %v202 = vshrl.u32 %v201, 7
    %v203 = vsub.s32 %v151, %v202
    %v204 = vrot.slane %v197, %v203
    %v205 = vlaneseq
    %v206 = vshrl.u32 %v205, 7
    %v207 = vsub.s32 %v151, %v206
    %v208 = vrot.slane %v200, %v207
    %v209 = vsel %vm160, %v208, %v204
    %v211 = vsel %vm163, %v209, 0.0
    %212 = vadd.xlane.f32.xlu0 %v211
    %v213 = vpop.xlane.xlu0 %212
    %v214 = vadd.f32 %v172, %v213
    %vm215 = vcmask 1024
    %216 = vst.msk [vmem:[#allocation3] sm:$0x3] %vm215, %v214
    %217 = vst.msk [vmem:[#allocation2] sm:$0x3] %vm215, %v167
    // Predicated region
    $region26: #{tpu_custom_call.1} parent=1 // pred_check
      %p218 = pneg %p49
    $region27: #{tpu_custom_call.1} parent=1 // pred_check_branch
      %220 = sbr.rel (%p218) target = $region29
    $region28: #{tpu_custom_call.1} parent=1 // pred_region
      %v221 = vld [vmem:[#allocation2] sm:$0x3]
      %v222 = vld [vmem:[#allocation3] sm:$0x3]
      %v223 = vlog2.pop %v222
      %v224 = vmul.f32 %v223, 0.6931472
      %v225 = vadd.f32 %v221, %v224
      %v226 = vld [vmem:[#allocation4] sm:$0x3]
      %v227 = vsub.f32 %v225, %v226
      %228 = vst.msk [vmem:[%s3] sm:$0x3] %vm215, %v227
    $region29: #{tpu_custom_call.1} parent=1 // pred_fallthru
      _
    // Predicated region
    $region30: #{tpu_custom_call.1} parent=1 // pred_check
      _
    $region31: #{tpu_custom_call.1} parent=1 // pred_check_branch
      %230 = sbr.rel (0) target = $region33
    $region32: #{tpu_custom_call.1} parent=1 // pred_region
      _
    $region33: #{tpu_custom_call.1} parent=1 // pred_fallthru
      _
    // Predicated region
    $region34: #{tpu_custom_call.1} parent=1 // pred_check
      _
    $region35: #{tpu_custom_call.1} parent=1 // pred_check_branch
      %232 = sbr.rel (0) target = $region37
    $region36: #{tpu_custom_call.1} parent=1 // pred_region
      _
    $region37: #{tpu_custom_call.1} parent=1 // pred_fallthru
      _
    %233 = vsyncpa [#allocation6], 1
    %234 = vsyncpa [#allocation8], 1

</llo_original>
